<compile_context>
chip_gen: v7x
topology: tpu7x:2x2x1
jax: 0.10.0
libtpu: 0.0.40
codegen_flags: <defaults>
</compile_context>

<pallas_src>
import functools

import jax
import jax.numpy as jnp
from jax.experimental import pallas as pl
from jax.experimental.pallas import tpu as pltpu

W3_PAD = 8  # layer-3 output columns padded (with zeros) to a small round width


def _round_up(n, m):
    return ((n + m - 1) // m) * m


def _cdiv(a, b):
    return (a + b - 1) // b


def _mlp_kernel(num_classes, x_ref, w1_ref, b1_ref, w2_ref, b2_ref,
                w3_ref, b3_ref, o_ref):
    """One batch tile: (Linear+BN)->ReLU->(Linear+BN)->ReLU->Linear->Softmax."""
    x = x_ref[...]                                       # [TB, in] f32

    # Layer 1 (BN folded into w1/b1), f32 MXU inputs + f32 accumulation.
    h1 = jnp.dot(x, w1_ref[...], preferred_element_type=jnp.float32) + b1_ref[...]
    h1 = jnp.maximum(h1, 0.0)                            # ReLU (dropout = identity, eval)

    # Layer 2 (BN folded).
    h2 = jnp.dot(h1, w2_ref[...], preferred_element_type=jnp.float32) + b2_ref[...]
    h2 = jnp.maximum(h2, 0.0)

    # Layer 3: narrow (8-wide, zero-padded) output slab.
    logits = jnp.dot(h2, w3_ref[...], preferred_element_type=jnp.float32) + b3_ref[...]
    lg = logits[:, :num_classes]                         # drop pad columns before softmax

    # Numerically stable softmax over the real class columns; exact divide so
    # every row sums to 1 (approx reciprocal previously broke this).
    m = jnp.max(lg, axis=-1, keepdims=True)
    e = jnp.exp(lg - m)
    o_ref[...] = e / jnp.sum(e, axis=-1, keepdims=True)  # [TB, num_classes] f32


def malware_model_forward(x, prep, *, tile_b=4096):
    """x: [B, input_size] float32. prep: dict from prepare_params()."""
    B, in_features = x.shape
    num_classes = prep["num_classes"]
    w1, b1 = prep["w1f"], prep["b1f"]
    w2, b2 = prep["w2f"], prep["b2f"]
    w3, b3 = prep["w3p"], prep["b3p"]

    # ---- batch tile selection --------------------------------------------
    # TB ~= cdiv(B, n_tiles) rounded to 16 rows -> <16 padded rows per tile.
    # For B > 16 force at least 2 (even) grid steps so both v7x TensorCores
    # get work; big batches get tiles of ~tile_b rows to amortize the fixed
    # per-grid-step pipeline overhead.
    n_tiles = max(1, _cdiv(B, tile_b))
    if n_tiles == 1 and B > 16:
        n_tiles = 2
    if n_tiles > 1 and n_tiles % 2:
        n_tiles += 1
    TB = _round_up(_cdiv(B, n_tiles), 16)
    B_pad = _round_up(B, TB)
    grid = B_pad // TB

    if B_pad != B:
        # Only for ragged batches; <16 wasted rows per tile by construction.
        x = jnp.pad(x, ((0, B_pad - B), (0, 0)))

    kernel = functools.partial(_mlp_kernel, num_classes)
    const = lambda i: (0, 0)  # weights/biases: fetched once, VMEM-resident
    out = pl.pallas_call(
        kernel,
        out_shape=jax.ShapeDtypeStruct((B_pad, num_classes), jnp.float32),
        grid=(grid,),
        in_specs=[
            pl.BlockSpec((TB, in_features), lambda i: (i, 0)),  # x: batch-tiled
            pl.BlockSpec(w1.shape, const),
            pl.BlockSpec(b1.shape, const),
            pl.BlockSpec(w2.shape, const),
            pl.BlockSpec(b2.shape, const),
            pl.BlockSpec(w3.shape, const),
            pl.BlockSpec(b3.shape, const),
        ],
        out_specs=pl.BlockSpec((TB, num_classes), lambda i: (i, 0)),
        compiler_params=pltpu.CompilerParams(
            dimension_semantics=("parallel",),       # shard batch over v7x's 2 TCs
            vmem_limit_bytes=48 * 1024 * 1024,       # big tiles fit on v5e/v6e/v7x
        ),
    )(x, w1, b1, w2, b2, w3, b3)

    if B_pad != B:
        out = out[:B]
    return out


def init_params(key, input_size, num_classes=2):
    """Raw parameters mirroring the PyTorch module (weights stored [in, out])."""
    dims = [(input_size, 64), (64, 32), (32, num_classes)]
    keys = jax.random.split(key, 6)
    params = {}
    for i, (fan_in, fan_out) in enumerate(dims, start=1):
        bound = 1.0 / jnp.sqrt(jnp.float32(fan_in))
        params[f"w{i}"] = jax.random.uniform(keys[2 * (i - 1)], (fan_in, fan_out),
                                             minval=-bound, maxval=bound,
                                             dtype=jnp.float32)
        params[f"b{i}"] = jax.random.uniform(keys[2 * (i - 1) + 1], (1, fan_out),
                                             minval=-bound, maxval=bound,
                                             dtype=jnp.float32)
    for name, width in (("bn1", 64), ("bn2", 32)):   # fresh BatchNorm1d stats
        params[f"{name}_gamma"] = jnp.ones((1, width), jnp.float32)
        params[f"{name}_beta"] = jnp.zeros((1, width), jnp.float32)
        params[f"{name}_mean"] = jnp.zeros((1, width), jnp.float32)
        params[f"{name}_var"] = jnp.ones((1, width), jnp.float32)
    return params


def prepare_params(params, *, eps=1e-5, out_pad=W3_PAD):
    """Fold eval-mode BN into the Linear weights (all f32), zero-pad layer 3 to 8 cols."""
    s1 = params["bn1_gamma"] / jnp.sqrt(params["bn1_var"] + eps)
    t1 = params["bn1_beta"] - params["bn1_mean"] * s1
    s2 = params["bn2_gamma"] / jnp.sqrt(params["bn2_var"] + eps)
    t2 = params["bn2_beta"] - params["bn2_mean"] * s2

    w1f = params["w1"] * s1
    b1f = params["b1"] * s1 + t1
    w2f = params["w2"] * s2
    b2f = params["b2"] * s2 + t2

    w3, b3 = params["w3"], params["b3"]
    num_classes = w3.shape[1]
    pad = max(0, out_pad - num_classes)
    # Zero padding is harmless: padded logit columns are sliced off in-kernel
    # before the softmax, so they never affect the normalization.
    w3p = jnp.pad(w3, ((0, 0), (0, pad)))
    b3p = jnp.pad(b3, ((0, 0), (0, pad)))

    return {
        "w1f": w1f, "b1f": b1f,
        "w2f": w2f, "b2f": b2f,
        "w3p": w3p, "b3p": b3p,
        "num_classes": num_classes,
    }


def reference_forward_f32(x, params, eps=1e-5):
    """Full-precision eval-mode reference (PyTorch semantics)."""
    s1 = params["bn1_gamma"] / jnp.sqrt(params["bn1_var"] + eps)
    t1 = params["bn1_beta"] - params["bn1_mean"] * s1
    s2 = params["bn2_gamma"] / jnp.sqrt(params["bn2_var"] + eps)
    t2 = params["bn2_beta"] - params["bn2_mean"] * s2
    h = x @ params["w1"] + params["b1"]
    h = jnp.maximum(h * s1 + t1, 0.0)
    h = h @ params["w2"] + params["b2"]
    h = jnp.maximum(h * s2 + t2, 0.0)
    logits = h @ params["w3"] + params["b3"]
    return jax.nn.softmax(logits, axis=1)


if __name__ == "__main__":
    key = jax.random.PRNGKey(0)
    k_x, k_p = jax.random.split(key)

    batch, input_size, num_classes = 2, 16, 2
    x = jax.random.normal(k_x, (batch, input_size), dtype=jnp.float32)

    raw = init_params(k_p, input_size, num_classes)
    prep = prepare_params(raw)

    out = jax.block_until_ready(malware_model_forward(x, prep))
    assert out.shape == (batch, num_classes)

    ref = reference_forward_f32(x, raw)
    assert jnp.allclose(out, ref, atol=2e-3, rtol=0), (out, ref)
    # Exact normalization: each row is a valid probability distribution.
    assert jnp.allclose(jnp.sum(out, axis=1), 1.0, atol=1e-3)

    # Ragged, multi-tile batch: exercises padding + an even 2-step grid.
    x2 = jax.random.normal(k_x, (300, input_size), dtype=jnp.float32)
    out2 = jax.block_until_ready(malware_model_forward(x2, prep))
    ref2 = reference_forward_f32(x2, raw)
    assert out2.shape == (300, num_classes)
    assert jnp.allclose(out2, ref2, atol=2e-3, rtol=0)
    assert jnp.allclose(jnp.sum(out2, axis=1), 1.0, atol=1e-3)

    print("KERNEL_OK")
</pallas_src>

<mosaic_0001>
module attributes {stable_mosaic.version = 11 : i64} {
  func.func @_mlp_kernel(%arg0: i32, %arg1: memref<16x16xf32, #tpu.memory_space<vmem>>, %arg2: memref<16x64xf32, #tpu.memory_space<vmem>>, %arg3: memref<1x64xf32, #tpu.memory_space<vmem>>, %arg4: memref<64x32xf32, #tpu.memory_space<vmem>>, %arg5: memref<1x32xf32, #tpu.memory_space<vmem>>, %arg6: memref<32x8xf32, #tpu.memory_space<vmem>>, %arg7: memref<1x8xf32, #tpu.memory_space<vmem>>, %arg8: memref<16x2xf32, #tpu.memory_space<vmem>>) attributes {dimension_semantics = [#tpu.dimension_semantics<parallel>], iteration_bounds = array<i64: 1>, scalar_prefetch = 0 : i64, scratch_operands = 0 : i64, tpu.core_type = #tpu.core_type<tc>, window_params = [{transform_indices = @transform_0, window_bounds = array<i64: 16, 16>}, {pipeline_mode = #tpu.pipeline_mode<synchronous>, transform_indices = @transform_1, window_bounds = array<i64: 16, 64>}, {pipeline_mode = #tpu.pipeline_mode<synchronous>, transform_indices = @transform_2, window_bounds = array<i64: 1, 64>}, {pipeline_mode = #tpu.pipeline_mode<synchronous>, transform_indices = @transform_3, window_bounds = array<i64: 64, 32>}, {pipeline_mode = #tpu.pipeline_mode<synchronous>, transform_indices = @transform_4, window_bounds = array<i64: 1, 32>}, {pipeline_mode = #tpu.pipeline_mode<synchronous>, transform_indices = @transform_5, window_bounds = array<i64: 32, 8>}, {pipeline_mode = #tpu.pipeline_mode<synchronous>, transform_indices = @transform_6, window_bounds = array<i64: 1, 8>}, {transform_indices = @transform_7, window_bounds = array<i64: 16, 2>}]} {
    %c0 = arith.constant 0 : index
    %c0_0 = arith.constant 0 : index
    %0 = vector.load %arg1[%c0, %c0_0] : memref<16x16xf32, #tpu.memory_space<vmem>>, vector<16x16xf32>
    %c0_1 = arith.constant 0 : index
    %c0_2 = arith.constant 0 : index
    %1 = vector.load %arg2[%c0_1, %c0_2] : memref<16x64xf32, #tpu.memory_space<vmem>>, vector<16x64xf32>
    %cst = arith.constant dense<0.000000e+00> : vector<16x64xf32>
    %2 = tpu.matmul %0, %1, %cst {dimension_numbers = #tpu.dot_dimension_numbers<[1], [0], [0], [1], [0, 0, 1, 1], [], []>} : vector<16x16xf32>, vector<16x64xf32>, vector<16x64xf32> -> vector<16x64xf32>
    %c0_3 = arith.constant 0 : index
    %c0_4 = arith.constant 0 : index
    %3 = vector.load %arg3[%c0_3, %c0_4] : memref<1x64xf32, #tpu.memory_space<vmem>>, vector<1x64xf32>
    %4 = vector.broadcast %3 : vector<1x64xf32> to vector<16x64xf32>
    %5 = arith.addf %2, %4 : vector<16x64xf32>
    %cst_5 = arith.constant 0.000000e+00 : f32
    %6 = vector.broadcast %cst_5 : f32 to vector<16x64xf32>
    %7 = arith.maximumf %5, %6 : vector<16x64xf32>
    %c0_6 = arith.constant 0 : index
    %c0_7 = arith.constant 0 : index
    %8 = vector.load %arg4[%c0_6, %c0_7] : memref<64x32xf32, #tpu.memory_space<vmem>>, vector<64x32xf32>
    %cst_8 = arith.constant dense<0.000000e+00> : vector<16x32xf32>
    %9 = tpu.matmul %7, %8, %cst_8 {dimension_numbers = #tpu.dot_dimension_numbers<[1], [0], [0], [1], [0, 0, 1, 1], [], []>} : vector<16x64xf32>, vector<64x32xf32>, vector<16x32xf32> -> vector<16x32xf32>
    %c0_9 = arith.constant 0 : index
    %c0_10 = arith.constant 0 : index
    %10 = vector.load %arg5[%c0_9, %c0_10] : memref<1x32xf32, #tpu.memory_space<vmem>>, vector<1x32xf32>
    %11 = vector.broadcast %10 : vector<1x32xf32> to vector<16x32xf32>
    %12 = arith.addf %9, %11 : vector<16x32xf32>
    %cst_11 = arith.constant 0.000000e+00 : f32
    %13 = vector.broadcast %cst_11 : f32 to vector<16x32xf32>
    %14 = arith.maximumf %12, %13 : vector<16x32xf32>
    %c0_12 = arith.constant 0 : index
    %c0_13 = arith.constant 0 : index
    %15 = vector.load %arg6[%c0_12, %c0_13] : memref<32x8xf32, #tpu.memory_space<vmem>>, vector<32x8xf32>
    %cst_14 = arith.constant dense<0.000000e+00> : vector<16x8xf32>
    %16 = tpu.matmul %14, %15, %cst_14 {dimension_numbers = #tpu.dot_dimension_numbers<[1], [0], [0], [1], [0, 0, 1, 1], [], []>} : vector<16x32xf32>, vector<32x8xf32>, vector<16x8xf32> -> vector<16x8xf32>
    %c0_15 = arith.constant 0 : index
    %c0_16 = arith.constant 0 : index
    %17 = vector.load %arg7[%c0_15, %c0_16] : memref<1x8xf32, #tpu.memory_space<vmem>>, vector<1x8xf32>
    %18 = vector.broadcast %17 : vector<1x8xf32> to vector<16x8xf32>
    %19 = arith.addf %16, %18 : vector<16x8xf32>
    %20 = vector.extract_strided_slice %19 {offsets = [0, 0], sizes = [16, 2], strides = [1, 1]} : vector<16x8xf32> to vector<16x2xf32>
    %cst_17 = arith.constant dense<0xFF800000> : vector<16xf32>
    %21 = vector.multi_reduction <maximumf>, %20, %cst_17 [1] : vector<16x2xf32> to vector<16xf32>
    %22 = vector.shape_cast %21 : vector<16xf32> to vector<16x1xf32>
    %23 = vector.broadcast %22 : vector<16x1xf32> to vector<16x2xf32>
    %24 = arith.subf %20, %23 : vector<16x2xf32>
    %25 = math.exp %24 : vector<16x2xf32>
    %cst_18 = arith.constant dense<0.000000e+00> : vector<16xf32>
    %26 = vector.multi_reduction <add>, %25, %cst_18 [1] : vector<16x2xf32> to vector<16xf32>
    %27 = vector.shape_cast %26 : vector<16xf32> to vector<16x1xf32>
    %28 = vector.broadcast %27 : vector<16x1xf32> to vector<16x2xf32>
    %29 = arith.divf %25, %28 : vector<16x2xf32>
    %c0_19 = arith.constant 0 : index
    %c0_20 = arith.constant 0 : index
    %30 = vector.load %arg8[%c0_19, %c0_20] : memref<16x2xf32, #tpu.memory_space<vmem>>, vector<16x2xf32>
    tpu.vector_store %arg8[%c0_19, %c0_20], %29 {strides = array<i32>} : memref<16x2xf32, #tpu.memory_space<vmem>>, vector<16x2xf32>,
    return
  }
  func.func @transform_0(%arg0: i32) -> (i32, i32) {
    %c0_i32 = arith.constant 0 : i32
    %c0_i32_0 = arith.constant 0 : i32
    return %arg0, %c0_i32 : i32, i32
  }
  func.func @transform_1(%arg0: i32) -> (i32, i32) {
    %c0_i32 = arith.constant 0 : i32
    %c0_i32_0 = arith.constant 0 : i32
    %c0_i32_1 = arith.constant 0 : i32
    return %c0_i32, %c0_i32_0 : i32, i32
  }
  func.func @transform_2(%arg0: i32) -> (i32, i32) {
    %c0_i32 = arith.constant 0 : i32
    %c0_i32_0 = arith.constant 0 : i32
    %c0_i32_1 = arith.constant 0 : i32
    return %c0_i32, %c0_i32_0 : i32, i32
  }
  func.func @transform_3(%arg0: i32) -> (i32, i32) {
    %c0_i32 = arith.constant 0 : i32
    %c0_i32_0 = arith.constant 0 : i32
    %c0_i32_1 = arith.constant 0 : i32
    return %c0_i32, %c0_i32_0 : i32, i32
  }
  func.func @transform_4(%arg0: i32) -> (i32, i32) {
    %c0_i32 = arith.constant 0 : i32
    %c0_i32_0 = arith.constant 0 : i32
    %c0_i32_1 = arith.constant 0 : i32
    return %c0_i32, %c0_i32_0 : i32, i32
  }
  func.func @transform_5(%arg0: i32) -> (i32, i32) {
    %c0_i32 = arith.constant 0 : i32
    %c0_i32_0 = arith.constant 0 : i32
    %c0_i32_1 = arith.constant 0 : i32
    return %c0_i32, %c0_i32_0 : i32, i32
  }
  func.func @transform_6(%arg0: i32) -> (i32, i32) {
    %c0_i32 = arith.constant 0 : i32
    %c0_i32_0 = arith.constant 0 : i32
    %c0_i32_1 = arith.constant 0 : i32
    return %c0_i32, %c0_i32_0 : i32, i32
  }
  func.func @transform_7(%arg0: i32) -> (i32, i32) {
    %c0_i32 = arith.constant 0 : i32
    %c0_i32_0 = arith.constant 0 : i32
    return %arg0, %c0_i32 : i32, i32
  }
}

</mosaic_0001>

<llo_original>
// kernel: tpu_custom_call.1
$region0: #{tpu_custom_call.1}
  #allocation0 [shape = 'u32[]', space=smem, size = 0x4, offset = 0x4, fixed_abs, tag = 'smem constant byte address 0x4 - core index']
  #allocation1 [shape = 'u32[144,128]{1,0:T(1,128)}', space=vmem, size = 0x12000, scoped, tag = 'internal scratch']
  %s0 = inlined_call_operand.vmem [shape: f32[16,16], index: 0, kind: input, shape index: {}]
  %s1 = inlined_call_operand.vmem [shape: f32[16,64], index: 1, kind: input, shape index: {}]
  %s2 = inlined_call_operand.vmem [shape: f32[1,64], index: 2, kind: input, shape index: {}]
  %s3 = inlined_call_operand.vmem [shape: f32[64,32], index: 3, kind: input, shape index: {}]
  %s4 = inlined_call_operand.vmem [shape: f32[1,32], index: 4, kind: input, shape index: {}]
  %s5 = inlined_call_operand.vmem [shape: f32[32,8], index: 5, kind: input, shape index: {}]
  %s6 = inlined_call_operand.vmem [shape: f32[1,8], index: 6, kind: input, shape index: {}]
  %s7 = inlined_call_operand.vmem [shape: f32[16,2], index: 7, kind: output, shape index: {}]
  %s8 = sld [smem:[#allocation0]]
  $region38: #{tpu_custom_call.1} parent=0
    _
  %s10 = ssub.s32 1, %s8
  %s11 = scalar_select 0, %s10, %s8
  // Predicated region
  $region2: #{tpu_custom_call.1} parent=0 // pred_check
    _
  $region3: #{tpu_custom_call.1} parent=0 // pred_check_branch
    %13 = sbr.rel (0) target = $region5
  $region4: #{tpu_custom_call.1} parent=0 // pred_region
    _
  $region5: #{tpu_custom_call.1} parent=0 // pred_fallthru
    _
  // Predicated region
  $region6: #{tpu_custom_call.1} parent=0 // pred_check
    _
  $region7: #{tpu_custom_call.1} parent=0 // pred_check_branch
    %15 = sbr.rel (0) target = $region9
  $region8: #{tpu_custom_call.1} parent=0 // pred_region
    _
  $region9: #{tpu_custom_call.1} parent=0 // pred_fallthru
    _
  // Predicated region
  $region10: #{tpu_custom_call.1} parent=0 // pred_check
    _
  $region11: #{tpu_custom_call.1} parent=0 // pred_check_branch
    %17 = sbr.rel (0) target = $region13
  $region12: #{tpu_custom_call.1} parent=0 // pred_region
    _
  $region13: #{tpu_custom_call.1} parent=0 // pred_fallthru
    _
  // Predicated region
  $region14: #{tpu_custom_call.1} parent=0 // pred_check
    _
  $region15: #{tpu_custom_call.1} parent=0 // pred_check_branch
    %19 = sbr.rel (0) target = $region17
  $region16: #{tpu_custom_call.1} parent=0 // pred_region
    _
  $region17: #{tpu_custom_call.1} parent=0 // pred_fallthru
    _
  // Predicated region
  $region18: #{tpu_custom_call.1} parent=0 // pred_check
    _
  $region19: #{tpu_custom_call.1} parent=0 // pred_check_branch
    %21 = sbr.rel (0) target = $region21
  $region20: #{tpu_custom_call.1} parent=0 // pred_region
    _
  $region21: #{tpu_custom_call.1} parent=0 // pred_fallthru
    _
  // Predicated region
  $region22: #{tpu_custom_call.1} parent=0 // pred_check
    _
  $region23: #{tpu_custom_call.1} parent=0 // pred_check_branch
    %23 = sbr.rel (0) target = $region25
  $region24: #{tpu_custom_call.1} parent=0 // pred_region
    _
  $region25: #{tpu_custom_call.1} parent=0 // pred_fallthru
    _
  // Predicated region
  $region26: #{tpu_custom_call.1} parent=0 // pred_check
    _
  $region27: #{tpu_custom_call.1} parent=0 // pred_check_branch
    %25 = sbr.rel (0) target = $region29
  $region28: #{tpu_custom_call.1} parent=0 // pred_region
    _
  $region29: #{tpu_custom_call.1} parent=0 // pred_fallthru
    _
  %v26 = vld [vmem:[%s0] sm:$0xff]
  %v27 = vld [vmem:[%s0 + $0x8] sm:$0xff]
  %v28 = vld [vmem:[%s1] sm:$0xff]
  %v29 = vld [vmem:[%s1 + $0x8] sm:$0xff]
  %v30 = vld [vmem:[%s2] sm:$0x1]
  %v32 = vlaneseq
  %v33 = vshrl.u32 %v32, 7
  %v34 = vsub.s32 0, %v33
  %v35 = vrot.slane %v30, %v34
  %vm37 = vcmask 130048
  %v39 = vsel %vm37, %v26, 0
  %v42 = vsel %vm37, %v27, 0
  %44 = vmatprep.subr.mxu0 0.0
  %45 = vmatpush1.msra.mxu0 %v28
  %46 = vmatprep.subr.mxu0 0.0
  %47 = vmatpush1.msra.mxu0 %v29
  %48 = vmatprep.subr.mxu0 0.0
  %49 = vmatpush1.msra.mxu0 0.0
  %50 = vmatprep.subr.mxu0 0.0
  %51 = vmatpush1.msra.mxu0 0.0
  %52 = vmatprep.subr.mxu0 0.0
  %53 = vmatpush1.msra.mxu0 0.0
  %54 = vmatprep.subr.mxu0 0.0
  %55 = vmatpush1.msra.mxu0 0.0
  %56 = vmatprep.subr.mxu0 0.0
  %57 = vmatpush1.msra.mxu0 0.0
  %58 = vmatprep.subr.mxu0 0.0
  %59 = vmatpush1.msra.mxu0 0.0
  %60 = vmatprep.subr.mxu0 0.0
  %61 = vmatpush1.msra.mxu0 0.0
  %62 = vmatprep.subr.mxu0 0.0
  %63 = vmatpush1.msra.mxu0 0.0
  %64 = vmatprep.subr.mxu0 0.0
  %65 = vmatpush1.msra.mxu0 0.0
  %66 = vmatprep.subr.mxu0 0.0
  %67 = vmatpush1.msra.mxu0 0.0
  %68 = vmatprep.subr.mxu0 0.0
  %69 = vmatpush1.msra.mxu0 0.0
  %70 = vmatprep.subr.mxu0 0.0
  %71 = vmatpush1.msra.mxu0 0.0
  %72 = vmatprep.subr.mxu0 0.0
  %73 = vmatpush1.msra.mxu0 0.0
  %74 = vmatprep.subr.mxu0 0.0
  %75 = vmatpush1.msra.mxu0 0.0
  %76 = vmatprep.subr.mxu0 0.0
  %77 = vmatpush1.msra.mxu0 0.0
  %78 = vmatprep.subr.mxu0 0.0
  %79 = vmatpush1.msra.mxu0 0.0
  %80 = vmatprep.subr.mxu0 0.0
  %81 = vmatpush1.msra.mxu0 0.0
  %82 = vmatprep.subr.mxu0 0.0
  %83 = vmatpush1.msra.mxu0 0.0
  %84 = vmatprep.subr.mxu0 0.0
  %85 = vmatpush1.msra.mxu0 0.0
  %86 = vmatprep.subr.mxu0 0.0
  %87 = vmatpush1.msra.mxu0 0.0
  %88 = vmatprep.subr.mxu0 0.0
  %89 = vmatpush1.msra.mxu0 0.0
  %90 = vmatprep.subr.mxu0 0.0
  %91 = vmatpush1.msra.mxu0 0.0
  %92 = vmatprep.subr.mxu0 0.0
  %93 = vmatpush1.msra.mxu0 0.0
  %94 = vmatprep.subr.mxu0 0.0
  %95 = vmatpush1.msra.mxu0 0.0
  %96 = vmatprep.subr.mxu0 0.0
  %97 = vmatpush1.msra.mxu0 0.0
  %98 = vmatprep.subr.mxu0 0.0
  %99 = vmatpush1.msra.mxu0 0.0
  %100 = vmatprep.subr.mxu0 0.0
  %101 = vmatpush1.msra.mxu0 0.0
  %102 = vmatprep.subr.mxu0 0.0
  %103 = vmatpush1.msra.mxu0 0.0
  %104 = vmatprep.subr.mxu0 0.0
  %105 = vmatpush1.msra.mxu0 0.0
  %106 = vmatprep.subr.mxu0 0.0
  %107 = vmatpush1.msra.mxu0 0.0
  %108 = vmatprep.mubr.f32.mxu0 0.0
  %109 = vmatmul.mubr.f32.gmra.mrb[0].mxu0 %v39
  %v110 = vpop.f32.mrb[0].mxu0
  %v111 = vadd.f32 %v35, %v110
  %v112 = vpop.f32.mrb[0].mxu0
  %113 = vmatprep.mubr.f32.mxu0 0.0
  %114 = vmatmul.mubr.f32.gmra.mrb[0].mxu0 %v42
  %v115 = vpop.f32.mrb[0].mxu0
  %v116 = vadd.f32 %v35, %v115
  %v117 = vpop.f32.mrb[0].mxu0
  %118 = vdwg.mxu0
  %v119 = vmax.f32 %v111, 0.0
  %v120 = vmax.f32 %v116, 0.0
  %v121 = vld [vmem:[%s3] sm:$0xff]
  %v122 = vld [vmem:[%s3 + $0x8] sm:$0xff]
  %v123 = vld [vmem:[%s3 + $0x10] sm:$0xff]
  %v124 = vld [vmem:[%s3 + $0x18] sm:$0xff]
  %v125 = vld [vmem:[%s3 + $0x20] sm:$0xff]
  %v126 = vld [vmem:[%s3 + $0x28] sm:$0xff]
  %v127 = vld [vmem:[%s3 + $0x30] sm:$0xff]
  %v128 = vld [vmem:[%s3 + $0x38] sm:$0xff]
  %v129 = vld [vmem:[%s4] sm:$0x1]
  %v131 = vlaneseq
  %v132 = vshrl.u32 %v131, 7
  %v133 = vsub.s32 0, %v132
  %v134 = vrot.slane %v129, %v133
  %vm136 = vcmask 523264
  %v138 = vsel %vm136, %v119, 0
  %v141 = vsel %vm136, %v120, 0
  %143 = vmatprep.subr.mxu0 0.0
  %144 = vmatpush1.msra.mxu0 %v121
  %145 = vmatprep.subr.mxu0 0.0
  %146 = vmatpush1.msra.mxu0 %v122
  %147 = vmatprep.subr.mxu0 0.0
  %148 = vmatpush1.msra.mxu0 %v123
  %149 = vmatprep.subr.mxu0 0.0
  %150 = vmatpush1.msra.mxu0 %v124
  %151 = vmatprep.subr.mxu0 0.0
  %152 = vmatpush1.msra.mxu0 %v125
  %153 = vmatprep.subr.mxu0 0.0
  %154 = vmatpush1.msra.mxu0 %v126
  %155 = vmatprep.subr.mxu0 0.0
  %156 = vmatpush1.msra.mxu0 %v127
  %157 = vmatprep.subr.mxu0 0.0
  %158 = vmatpush1.msra.mxu0 %v128
  %159 = vmatprep.subr.mxu0 0.0
  %160 = vmatpush1.msra.mxu0 0.0
  %161 = vmatprep.subr.mxu0 0.0
  %162 = vmatpush1.msra.mxu0 0.0
  %163 = vmatprep.subr.mxu0 0.0
  %164 = vmatpush1.msra.mxu0 0.0
  %165 = vmatprep.subr.mxu0 0.0
  %166 = vmatpush1.msra.mxu0 0.0
  %167 = vmatprep.subr.mxu0 0.0
  %168 = vmatpush1.msra.mxu0 0.0
  %169 = vmatprep.subr.mxu0 0.0
  %170 = vmatpush1.msra.mxu0 0.0
  %171 = vmatprep.subr.mxu0 0.0
  %172 = vmatpush1.msra.mxu0 0.0
  %173 = vmatprep.subr.mxu0 0.0
  %174 = vmatpush1.msra.mxu0 0.0
  %175 = vmatprep.subr.mxu0 0.0
  %176 = vmatpush1.msra.mxu0 0.0
  %177 = vmatprep.subr.mxu0 0.0
  %178 = vmatpush1.msra.mxu0 0.0
  %179 = vmatprep.subr.mxu0 0.0
  %180 = vmatpush1.msra.mxu0 0.0
  %181 = vmatprep.subr.mxu0 0.0
  %182 = vmatpush1.msra.mxu0 0.0
  %183 = vmatprep.subr.mxu0 0.0
  %184 = vmatpush1.msra.mxu0 0.0
  %185 = vmatprep.subr.mxu0 0.0
  %186 = vmatpush1.msra.mxu0 0.0
  %187 = vmatprep.subr.mxu0 0.0
  %188 = vmatpush1.msra.mxu0 0.0
  %189 = vmatprep.subr.mxu0 0.0
  %190 = vmatpush1.msra.mxu0 0.0
  %191 = vmatprep.subr.mxu0 0.0
  %192 = vmatpush1.msra.mxu0 0.0
  %193 = vmatprep.subr.mxu0 0.0
  %194 = vmatpush1.msra.mxu0 0.0
  %195 = vmatprep.subr.mxu0 0.0
  %196 = vmatpush1.msra.mxu0 0.0
  %197 = vmatprep.subr.mxu0 0.0
  %198 = vmatpush1.msra.mxu0 0.0
  %199 = vmatprep.subr.mxu0 0.0
  %200 = vmatpush1.msra.mxu0 0.0
  %201 = vmatprep.subr.mxu0 0.0
  %202 = vmatpush1.msra.mxu0 0.0
  %203 = vmatprep.subr.mxu0 0.0
  %204 = vmatpush1.msra.mxu0 0.0
  %205 = vmatprep.subr.mxu0 0.0
  %206 = vmatpush1.msra.mxu0 0.0
  %207 = vmatprep.mubr.f32.mxu0 0.0
  %208 = vmatmul.mubr.f32.gmra.mrb[0].mxu0 %v138
  %v209 = vpop.f32.mrb[0].mxu0
  %v210 = vadd.f32 %v134, %v209
  %v211 = vpop.f32.mrb[0].mxu0
  %212 = vmatprep.mubr.f32.mxu0 0.0
  %213 = vmatmul.mubr.f32.gmra.mrb[0].mxu0 %v141
  %v214 = vpop.f32.mrb[0].mxu0
  %v215 = vadd.f32 %v134, %v214
  %v216 = vpop.f32.mrb[0].mxu0
  %217 = vdwg.mxu0
  %v218 = vmax.f32 %v210, 0.0
  %v219 = vmax.f32 %v215, 0.0
  %v220 = vld [vmem:[%s5] sm:$0xff]
  %v221 = vld [vmem:[%s5 + $0x8] sm:$0xff]
  %v222 = vld [vmem:[%s5 + $0x10] sm:$0xff]
  %v223 = vld [vmem:[%s5 + $0x18] sm:$0xff]
  %v224 = vld [vmem:[%s6] sm:$0x1]
  %v226 = vlaneseq
  %v227 = vshrl.u32 %v226, 7
  %v228 = vsub.s32 0, %v227
  %v229 = vrot.slane %v224, %v228
  %vm231 = vcmask 261120
  %v233 = vsel %vm231, %v218, 0
  %v236 = vsel %vm231, %v219, 0
  %238 = vmatprep.subr.mxu0 0.0
  %239 = vmatpush1.msra.mxu0 %v220
  %240 = vmatprep.subr.mxu0 0.0
  %241 = vmatpush1.msra.mxu0 %v221
  %242 = vmatprep.subr.mxu0 0.0
  %243 = vmatpush1.msra.mxu0 %v222
  %244 = vmatprep.subr.mxu0 0.0
  %245 = vmatpush1.msra.mxu0 %v223
  %246 = vmatprep.subr.mxu0 0.0
  %247 = vmatpush1.msra.mxu0 0.0
  %248 = vmatprep.subr.mxu0 0.0
  %249 = vmatpush1.msra.mxu0 0.0
  %250 = vmatprep.subr.mxu0 0.0
  %251 = vmatpush1.msra.mxu0 0.0
  %252 = vmatprep.subr.mxu0 0.0
  %253 = vmatpush1.msra.mxu0 0.0
  %254 = vmatprep.subr.mxu0 0.0
  %255 = vmatpush1.msra.mxu0 0.0
  %256 = vmatprep.subr.mxu0 0.0
  %257 = vmatpush1.msra.mxu0 0.0
  %258 = vmatprep.subr.mxu0 0.0
  %259 = vmatpush1.msra.mxu0 0.0
  %260 = vmatprep.subr.mxu0 0.0
  %261 = vmatpush1.msra.mxu0 0.0
  %262 = vmatprep.subr.mxu0 0.0
  %263 = vmatpush1.msra.mxu0 0.0
  %264 = vmatprep.subr.mxu0 0.0
  %265 = vmatpush1.msra.mxu0 0.0
  %266 = vmatprep.subr.mxu0 0.0
  %267 = vmatpush1.msra.mxu0 0.0
  %268 = vmatprep.subr.mxu0 0.0
  %269 = vmatpush1.msra.mxu0 0.0
  %270 = vmatprep.subr.mxu0 0.0
  %271 = vmatpush1.msra.mxu0 0.0
  %272 = vmatprep.subr.mxu0 0.0
  %273 = vmatpush1.msra.mxu0 0.0
  %274 = vmatprep.subr.mxu0 0.0
  %275 = vmatpush1.msra.mxu0 0.0
  %276 = vmatprep.subr.mxu0 0.0
  %277 = vmatpush1.msra.mxu0 0.0
  %278 = vmatprep.subr.mxu0 0.0
  %279 = vmatpush1.msra.mxu0 0.0
  %280 = vmatprep.subr.mxu0 0.0
  %281 = vmatpush1.msra.mxu0 0.0
  %282 = vmatprep.subr.mxu0 0.0
  %283 = vmatpush1.msra.mxu0 0.0
  %284 = vmatprep.subr.mxu0 0.0
  %285 = vmatpush1.msra.mxu0 0.0
  %286 = vmatprep.subr.mxu0 0.0
  %287 = vmatpush1.msra.mxu0 0.0
  %288 = vmatprep.subr.mxu0 0.0
  %289 = vmatpush1.msra.mxu0 0.0
  %290 = vmatprep.subr.mxu0 0.0
  %291 = vmatpush1.msra.mxu0 0.0
  %292 = vmatprep.subr.mxu0 0.0
  %293 = vmatpush1.msra.mxu0 0.0
  %294 = vmatprep.subr.mxu0 0.0
  %295 = vmatpush1.msra.mxu0 0.0
  %296 = vmatprep.subr.mxu0 0.0
  %297 = vmatpush1.msra.mxu0 0.0
  %298 = vmatprep.subr.mxu0 0.0
  %299 = vmatpush1.msra.mxu0 0.0
  %300 = vmatprep.subr.mxu0 0.0
  %301 = vmatpush1.msra.mxu0 0.0
  %302 = vmatprep.mubr.f32.mxu0 0.0
  %303 = vmatmul.mubr.f32.gmra.mrb[0].mxu0 %v233
  %v304 = vpop.f32.mrb[0].mxu0
  %v305 = vadd.f32 %v229, %v304
  %v306 = vpop.f32.mrb[0].mxu0
  %307 = vmatprep.mubr.f32.mxu0 0.0
  %308 = vmatmul.mubr.f32.gmra.mrb[0].mxu0 %v236
  %v309 = vpop.f32.mrb[0].mxu0
  %v310 = vadd.f32 %v229, %v309
  %v311 = vpop.f32.mrb[0].mxu0
  %312 = vdwg.mxu0
  %vm313 = vcmask 15360
  %v314 = vsel %vm313, %v305, -inf
  %315 = vmax.xlane.f32.xlu0 %v314
  %v316 = vpop.xlane.xlu0 %315
  %v317 = vsel %vm313, %v310, -inf
  %318 = vmax.xlane.f32.xlu0 %v317
  %v319 = vpop.xlane.xlu0 %318
  %v320 = vsub.f32 %v305, %v316
  %v321 = vsub.f32 %v310, %v319
  %v322 = vmul.f32 %v320, 1.442695
  %v323 = vpow.pop %v322
  %v324 = vmul.f32 %v321, 1.442695
  %v325 = vpow.pop %v324
  %v326 = vsel %vm313, %v323, 0.0
  %327 = vadd.xlane.f32.xlu0 %v326
  %v328 = vpop.xlane.xlu0 %327
  %v329 = vsel %vm313, %v325, 0.0
  %330 = vadd.xlane.f32.xlu0 %v329
  %v331 = vpop.xlane.xlu0 %330
  %v332 = vrcp.pop %v328
  %v333 = vmul.f32 %v323, %v332
  %v334 = vrcp.pop %v331
  %v335 = vmul.f32 %v325, %v334
  %336 = vst.msk [vmem:[%s7] sm:$0xff] %vm313, %v333
  %337 = vst.msk [vmem:[%s7 + $0x8] sm:$0xff] %vm313, %v335
  // Predicated region
  $region30: #{tpu_custom_call.1} parent=0 // pred_check
    _
  $region31: #{tpu_custom_call.1} parent=0 // pred_check_branch
    %339 = sbr.rel (0) target = $region33
  $region32: #{tpu_custom_call.1} parent=0 // pred_region
    _
  $region33: #{tpu_custom_call.1} parent=0 // pred_fallthru
    _
  // Predicated region
  $region34: #{tpu_custom_call.1} parent=0 // pred_check
    _
  $region35: #{tpu_custom_call.1} parent=0 // pred_check_branch
    %341 = sbr.rel (0) target = $region37
  $region36: #{tpu_custom_call.1} parent=0 // pred_region
    _
  $region37: #{tpu_custom_call.1} parent=0 // pred_fallthru
    _

</llo_original>
